<compile_context>
chip_gen: v7x
topology: tpu7x:2x2x1
jax: 0.10.0
libtpu: 0.0.40
codegen_flags: <defaults>
</compile_context>

<pallas_src>
import functools

import jax
import jax.numpy as jnp
from jax import lax
from jax.experimental import pallas as pl
from jax.experimental.pallas import tpu as pltpu


def _round_up(x, m):
    return ((x + m - 1) // m) * m


def _cdiv(a, b):
    return -(-a // b)


def _vmem_capacity_bytes():
    try:
        return int(pltpu.get_tpu_info().vmem_capacity_bytes)
    except Exception:
        return 64 * 1024 * 1024  # conservative fallback (v7x-sized)


_VMEM_CAP = _vmem_capacity_bytes()


def _gelu(x, approximate):
    if approximate:
        # tanh form: the transcendental goes to the EUP slot (free vs VALU);
        # ~6-8 VPU ops/elem instead of the ~15-20-op erf polynomial.
        c = 0.7978845608028654  # sqrt(2/pi)
        return 0.5 * x * (1.0 + jnp.tanh(c * (x + 0.044715 * (x * x * x))))
    # exact erf: matches torch.nn.GELU() default bit-for-bit semantics.
    return 0.5 * x * (1.0 + lax.erf(x * 0.7071067811865476))


def _gmodfc_kernel(x_ref, c_ref, wm_ref, bm_ref, wa_ref, ba_ref, o_ref, *, approx):
    # aux-dot -> GELU -> main-dot -> mul (lets the GELU chain overlap the
    # main matmul's MXU work and keeps only one live f32 temp).
    aux = jnp.dot(c_ref[...], wa_ref[...], preferred_element_type=jnp.float32)
    gate = _gelu(aux + ba_ref[...], approx)
    main = jnp.dot(x_ref[...], wm_ref[...], preferred_element_type=jnp.float32)
    o_ref[...] = ((main + bm_ref[...]) * gate).astype(o_ref.dtype)


def _gmodfc_kernel_ktiled(x_ref, c_ref, wm_ref, bm_ref, wa_ref, ba_ref, o_ref,
                          acc_main_ref, acc_aux_ref, *, nk_main, nk_aux, nk, approx):
    k = pl.program_id(2)

    @pl.when(k == 0)
    def _init():
        acc_main_ref[...] = jnp.zeros_like(acc_main_ref)
        acc_aux_ref[...] = jnp.zeros_like(acc_aux_ref)

    def _acc_aux():
        acc_aux_ref[...] += jnp.dot(c_ref[...], wa_ref[...],
                                    preferred_element_type=jnp.float32)

    def _acc_main():
        acc_main_ref[...] += jnp.dot(x_ref[...], wm_ref[...],
                                     preferred_element_type=jnp.float32)

    # aux partial sum first; main second (epilogue GELU then overlaps the
    # final main-matmul MXU work on the last K step).
    if nk_aux == nk:
        _acc_aux()
    else:
        pl.when(k < nk_aux)(_acc_aux)
    if nk_main == nk:
        _acc_main()
    else:
        pl.when(k < nk_main)(_acc_main)

    @pl.when(k == nk - 1)
    def _epilogue():
        gate = _gelu(acc_aux_ref[...] + ba_ref[...], approx)
        o_ref[...] = ((acc_main_ref[...] + bm_ref[...]) * gate).astype(o_ref.dtype)


def gmodfc_prepare_params(w_main, b_main, w_aux, b_aux, compute_dtype=None):
    """One-time relayout of torch-style [out, in] Linear weights to [in, out]
    in the compute dtype. Call ONCE outside the hot path so no per-call
    transpose/cast HBM traffic is paid (perf-review item)."""
    cdt = jnp.dtype(compute_dtype) if compute_dtype is not None else jnp.asarray(w_main).dtype
    wm_t = jnp.asarray(w_main).T.astype(cdt)                 # (F_in,  F_out)
    wa_t = jnp.asarray(w_aux).T.astype(cdt)                  # (F_ctx, F_out)
    bm = jnp.asarray(b_main).reshape(1, -1).astype(jnp.float32)
    ba = jnp.asarray(b_aux).reshape(1, -1).astype(jnp.float32)
    return wm_t, bm, wa_t, ba


@functools.partial(jax.jit, static_argnames=(
    "tile_rows", "tile_n", "tile_k", "compute_dtype", "approximate_gelu"))
def gmodfc(x, context, w_main_t, b_main, w_aux_t, b_aux, *,
           tile_rows=256, tile_n=512, tile_k=None, compute_dtype=None,
           approximate_gelu=True):
    """x: [..., F_in], context: [..., F_ctx] -> [..., F_out].

    Weights must be pre-prepared with gmodfc_prepare_params (shape [in, out]).
    tile_k: None = auto K-tiling when the full-K working set exceeds the VMEM
    budget; 0 = never; int > 0 = force that K tile. On v5e pass
    compute_dtype=jnp.bfloat16 (f32 accumulation is kept either way).
    """
    lead_shape = x.shape[:-1]
    F_in = x.shape[-1]
    F_ctx = context.shape[-1]
    F_out = w_main_t.shape[1]
    out_dtype = x.dtype

    cdt = jnp.dtype(compute_dtype) if compute_dtype is not None else jnp.dtype(w_main_t.dtype)
    isz = cdt.itemsize
    osz = jnp.dtype(out_dtype).itemsize

    # Reshape is metadata-only; astype is a no-op when dtypes already match
    # (i.e. when params were prepared in the compute dtype).
    x2 = x.reshape(-1, F_in).astype(cdt)
    c2 = context.reshape(-1, F_ctx).astype(cdt)
    wm = w_main_t.astype(cdt)
    wa = w_aux_t.astype(cdt)
    bm = b_main.reshape(1, F_out).astype(jnp.float32)
    ba = b_aux.reshape(1, F_out).astype(jnp.float32)
    n_rows = x2.shape[0]

    # Row tile: multiple of 8 sublanes (16 for packed sub-32-bit dtypes); ragged
    # last row tile is handled by Pallas partial-block masking (no jnp.pad).
    row_gran = 16 if isz < 4 else 8
    tr = max(row_gran,
             _round_up(min(tile_rows, _round_up(n_rows, row_gran)), row_gran))
    # Lane tile: full dim when F_out <= 128, else a 128-multiple (ragged last
    # N tile handled by masked stores).
    if F_out <= 128:
        tn = F_out
    else:
        tn = max(128, min(_round_up(tile_n, 128), _round_up(F_out, 128)))
    num_r = _cdiv(n_rows, tr)
    num_n = _cdiv(F_out, tn)

    # Per-generation VMEM budget: ~78% of physical (≈50 MiB v7x, ≈100 MiB v5e/v6e).
    vmem_ceiling = int(_VMEM_CAP * 0.78)

    # Full-K (no K tiling) working set: double-buffered tiles + live f32 temps.
    full_k_bytes = (2 * tr * (F_in + F_ctx) * isz      # x / context tiles
                    + 2 * (F_in + F_ctx) * tn * isz    # weight tiles
                    + 4 * tn * 4                       # bias tiles (f32)
                    + 2 * tr * tn * osz                # output tiles
                    + 2 * tr * tn * 4)                 # f32 temporaries

    # Decide whether to add the K-reduction grid axis.
    if tile_k is not None and tile_k > 0:
        tk = max(128, min(_round_up(tile_k, 128), _round_up(max(F_in, F_ctx), 128)))
        use_k = max(F_in, F_ctx) > tk
    elif tile_k is None and full_k_bytes > vmem_ceiling:
        tk = 512
        use_k = max(F_in, F_ctx) > tk
    else:
        tk = None
        use_k = False

    if use_k:
        # Zero-pad K dims to tile multiples so partial K blocks never inject
        # garbage into the accumulation (only triggers on the ragged-K + K-tiled
        # path; ideally F_in / F_ctx are multiples of tile_k).
        Kin = _round_up(F_in, tk)
        Kc = _round_up(F_ctx, tk)
        if Kin != F_in:
            x2 = jnp.pad(x2, ((0, 0), (0, Kin - F_in)))
            wm = jnp.pad(wm, ((0, Kin - F_in), (0, 0)))
        if Kc != F_ctx:
            c2 = jnp.pad(c2, ((0, 0), (0, Kc - F_ctx)))
            wa = jnp.pad(wa, ((0, Kc - F_ctx), (0, 0)))
        nk_main = Kin // tk
        nk_aux = Kc // tk
        nk = max(nk_main, nk_aux)

        k_main_ix = (lambda k: k) if nk_main == nk else (lambda k: jnp.minimum(k, nk_main - 1))
        k_aux_ix = (lambda k: k) if nk_aux == nk else (lambda k: jnp.minimum(k, nk_aux - 1))

        kernel = functools.partial(_gmodfc_kernel_ktiled, nk_main=nk_main,
                                   nk_aux=nk_aux, nk=nk, approx=approximate_gelu)
        grid = (num_r, num_n, nk)
        in_specs = [
            pl.BlockSpec((tr, tk), lambda r, n, k: (r, k_main_ix(k))),
            pl.BlockSpec((tr, tk), lambda r, n, k: (r, k_aux_ix(k))),
            pl.BlockSpec((tk, tn), lambda r, n, k: (k_main_ix(k), n)),
            pl.BlockSpec((1, tn), lambda r, n, k: (0, n)),
            pl.BlockSpec((tk, tn), lambda r, n, k: (k_aux_ix(k), n)),
            pl.BlockSpec((1, tn), lambda r, n, k: (0, n)),
        ]
        out_spec = pl.BlockSpec((tr, tn), lambda r, n, k: (r, n))
        scratch = [pltpu.VMEM((tr, tn), jnp.float32),   # main accumulator
                   pltpu.VMEM((tr, tn), jnp.float32)]   # aux accumulator
        semantics = ("parallel", "parallel", "arbitrary")
        tile_bytes = (2 * 2 * tr * tk * isz + 2 * 2 * tk * tn * isz + 4 * tn * 4
                      + 2 * tr * tn * osz + 2 * tr * tn * 4 + tr * tn * 4)
        streamed = (n_rows * (Kin + Kc) * isz * num_n
                    + ((Kin + Kc) * F_out * isz + 2 * F_out * 4) * num_r
                    + n_rows * F_out * osz)
    else:
        # Grid-order heuristic: compare the extra bytes re-streamed by each order.
        w_restream = (F_in + F_ctx) * F_out * isz * (num_r - 1)
        a_restream = n_rows * (F_in + F_ctx) * isz * (num_n - 1)
        weights_stationary = w_restream > a_restream
        if weights_stationary:
            grid = (num_n, num_r)           # rows inner: weights loaded once total
            rix = lambda a, b: b
            nix = lambda a, b: a
        else:
            grid = (num_r, num_n)           # N inner: activations loaded once total
            rix = lambda a, b: a
            nix = lambda a, b: b

        kernel = functools.partial(_gmodfc_kernel, approx=approximate_gelu)
        # TODO(synk): on v7x, if VMEM gets tight, set pipeline_mode=pl.Buffered(1)
        #             on the specs whose block index is constant along the inner axis.
        in_specs = [
            pl.BlockSpec((tr, F_in), lambda a, b: (rix(a, b), 0)),
            pl.BlockSpec((tr, F_ctx), lambda a, b: (rix(a, b), 0)),
            pl.BlockSpec((F_in, tn), lambda a, b: (0, nix(a, b))),
            pl.BlockSpec((1, tn), lambda a, b: (0, nix(a, b))),
            pl.BlockSpec((F_ctx, tn), lambda a, b: (0, nix(a, b))),
            pl.BlockSpec((1, tn), lambda a, b: (0, nix(a, b))),
        ]
        out_spec = pl.BlockSpec((tr, tn), lambda a, b: (rix(a, b), nix(a, b)))
        scratch = []
        semantics = ("parallel", "parallel")
        tile_bytes = full_k_bytes
        streamed = (n_rows * (F_in + F_ctx) * isz * (num_n if weights_stationary else 1)
                    + ((F_in + F_ctx) * F_out * isz + 2 * F_out * 4)
                    * (1 if weights_stationary else num_r)
                    + n_rows * F_out * osz)

    vmem_limit = int(min(vmem_ceiling, max(tile_bytes * 1.25, 16 * 1024 * 1024)))

    cost = pl.CostEstimate(
        flops=2 * n_rows * (F_in + F_ctx) * F_out + 4 * n_rows * F_out,
        transcendentals=n_rows * F_out,
        bytes_accessed=int(streamed),
    )

    out2 = pl.pallas_call(
        kernel,
        out_shape=jax.ShapeDtypeStruct((n_rows, F_out), out_dtype),
        grid_spec=pltpu.PrefetchScalarGridSpec(
            num_scalar_prefetch=0,
            grid=grid,
            in_specs=in_specs,
            out_specs=out_spec,
            scratch_shapes=tuple(scratch),
        ),
        compiler_params=pltpu.CompilerParams(
            dimension_semantics=semantics,
            vmem_limit_bytes=vmem_limit,
        ),
        cost_estimate=cost,
    )(x2, c2, wm, bm, wa, ba)

    return out2.reshape(*lead_shape, F_out)


def gmodfc_reference(x, context, w_main, b_main, w_aux, b_aux, approximate=False):
    main = jnp.dot(x, w_main.T, precision=lax.Precision.HIGHEST) + b_main
    aux = jnp.dot(context, w_aux.T, precision=lax.Precision.HIGHEST) + b_aux
    return main * _gelu(aux, approximate)


if __name__ == "__main__":
    def uniform_like_torch(k, fan_in, shape):
        bound = fan_in ** -0.5
        return jax.random.uniform(k, shape, jnp.float32, -bound, bound)

    def make_case(key, batch, seq, f_in, f_ctx, f_out):
        kx, kc, kwm, kbm, kwa, kba = jax.random.split(key, 6)
        x = jax.random.normal(kx, (batch, seq, f_in), dtype=jnp.float32)
        context = jax.random.normal(kc, (batch, seq, f_ctx), dtype=jnp.float32)
        w_main = uniform_like_torch(kwm, f_in, (f_out, f_in))
        b_main = uniform_like_torch(kbm, f_in, (f_out,))
        w_aux = uniform_like_torch(kwa, f_ctx, (f_out, f_ctx))
        b_aux = uniform_like_torch(kba, f_ctx, (f_out,))
        return x, context, w_main, b_main, w_aux, b_aux

    key = jax.random.PRNGKey(0)
    k1, k2, k3 = jax.random.split(key, 3)

    # Case 1: tiny shapes from the module spec; exact-erf GELU (torch parity)
    # and default tanh-approx GELU. Exercises the activations-stationary grid.
    x, ctx, wm_, bm_, wa_, ba_ = make_case(k1, 2, 8, 32, 16, 32)
    pm, pbm, pa, pba = gmodfc_prepare_params(wm_, bm_, wa_, ba_)
    out = jax.block_until_ready(gmodfc(x, ctx, pm, pbm, pa, pba, approximate_gelu=False))
    ref = gmodfc_reference(x, ctx, wm_, bm_, wa_, ba_, approximate=False)
    assert out.shape == (2, 8, 32)
    assert jnp.allclose(out, ref, atol=2e-3, rtol=2e-3), "case 1 (exact GELU) mismatch"

    out = jax.block_until_ready(gmodfc(x, ctx, pm, pbm, pa, pba))  # tanh-approx default
    ref = gmodfc_reference(x, ctx, wm_, bm_, wa_, ba_, approximate=True)
    assert jnp.allclose(out, ref, atol=2e-3, rtol=2e-3), "case 1 (tanh GELU) mismatch"

    # Case 2: multiple row tiles -> weights-stationary grid order.
    x, ctx, wm_, bm_, wa_, ba_ = make_case(k2, 4, 128, 192, 96, 256)
    pm, pbm, pa, pba = gmodfc_prepare_params(wm_, bm_, wa_, ba_)
    out = jax.block_until_ready(gmodfc(x, ctx, pm, pbm, pa, pba))
    ref = gmodfc_reference(x, ctx, wm_, bm_, wa_, ba_, approximate=True)
    assert out.shape == (4, 128, 256)
    assert jnp.allclose(out, ref, atol=2e-3, rtol=2e-3), "case 2 mismatch"

    # Case 3: forced K-reduction grid axis (ragged aux K), f32 and bf16 compute.
    x, ctx, wm_, bm_, wa_, ba_ = make_case(k3, 2, 64, 384, 200, 256)
    pm, pbm, pa, pba = gmodfc_prepare_params(wm_, bm_, wa_, ba_)
    out = jax.block_until_ready(
        gmodfc(x, ctx, pm, pbm, pa, pba, tile_k=128, approximate_gelu=False))
    ref = gmodfc_reference(x, ctx, wm_, bm_, wa_, ba_, approximate=False)
    assert out.shape == (2, 64, 256)
    assert jnp.allclose(out, ref, atol=2e-3, rtol=2e-3), "case 3 (f32 K-tiled) mismatch"

    pm16, pbm16, pa16, pba16 = gmodfc_prepare_params(
        wm_, bm_, wa_, ba_, compute_dtype=jnp.bfloat16)
    out16 = jax.block_until_ready(
        gmodfc(x, ctx, pm16, pbm16, pa16, pba16, tile_k=128,
               compute_dtype=jnp.bfloat16))
    ref = gmodfc_reference(x, ctx, wm_, bm_, wa_, ba_, approximate=True)
    assert jnp.allclose(out16, ref, atol=1e-1, rtol=1e-1), "case 3 (bf16 K-tiled) mismatch"

    print("KERNEL_OK")
</pallas_src>

<mosaic_0001>
module attributes {stable_mosaic.version = 11 : i64} {
  func.func @_gmodfc_kernel(%arg0: i32, %arg1: i32, %arg2: memref<16x32xf32, #tpu.memory_space<vmem>>, %arg3: memref<16x16xf32, #tpu.memory_space<vmem>>, %arg4: memref<32x32xf32, #tpu.memory_space<vmem>>, %arg5: memref<1x32xf32, #tpu.memory_space<vmem>>, %arg6: memref<16x32xf32, #tpu.memory_space<vmem>>, %arg7: memref<1x32xf32, #tpu.memory_space<vmem>>, %arg8: memref<16x32xf32, #tpu.memory_space<vmem>>) attributes {dimension_semantics = [#tpu.dimension_semantics<parallel>, #tpu.dimension_semantics<parallel>], iteration_bounds = array<i64: 1, 1>, scalar_prefetch = 0 : i64, scratch_operands = 0 : i64, tpu.core_type = #tpu.core_type<tc>, window_params = [{transform_indices = @transform_0, window_bounds = array<i64: 16, 32>}, {transform_indices = @transform_1, window_bounds = array<i64: 16, 16>}, {transform_indices = @transform_2, window_bounds = array<i64: 32, 32>}, {transform_indices = @transform_3, window_bounds = array<i64: 1, 32>}, {transform_indices = @transform_4, window_bounds = array<i64: 16, 32>}, {transform_indices = @transform_5, window_bounds = array<i64: 1, 32>}, {transform_indices = @transform_6, window_bounds = array<i64: 16, 32>}]} {
    %c0 = arith.constant 0 : index
    %c0_0 = arith.constant 0 : index
    %0 = vector.load %arg3[%c0, %c0_0] : memref<16x16xf32, #tpu.memory_space<vmem>>, vector<16x16xf32>
    %c0_1 = arith.constant 0 : index
    %c0_2 = arith.constant 0 : index
    %1 = vector.load %arg6[%c0_1, %c0_2] : memref<16x32xf32, #tpu.memory_space<vmem>>, vector<16x32xf32>
    %cst = arith.constant dense<0.000000e+00> : vector<16x32xf32>
    %2 = tpu.matmul %0, %1, %cst {dimension_numbers = #tpu.dot_dimension_numbers<[1], [0], [0], [1], [0, 0, 1, 1], [], []>} : vector<16x16xf32>, vector<16x32xf32>, vector<16x32xf32> -> vector<16x32xf32>
    %c0_3 = arith.constant 0 : index
    %c0_4 = arith.constant 0 : index
    %3 = vector.load %arg7[%c0_3, %c0_4] : memref<1x32xf32, #tpu.memory_space<vmem>>, vector<1x32xf32>
    %4 = vector.broadcast %3 : vector<1x32xf32> to vector<16x32xf32>
    %5 = arith.addf %2, %4 : vector<16x32xf32>
    %cst_5 = arith.constant 5.000000e-01 : f32
    %6 = vector.broadcast %cst_5 : f32 to vector<16x32xf32>
    %7 = arith.mulf %6, %5 : vector<16x32xf32>
    %cst_6 = arith.constant 0.707106769 : f32
    %8 = vector.broadcast %cst_6 : f32 to vector<16x32xf32>
    %9 = arith.mulf %5, %8 : vector<16x32xf32>
    %10 = math.erf %9 : vector<16x32xf32>
    %cst_7 = arith.constant 1.000000e+00 : f32
    %11 = vector.broadcast %cst_7 : f32 to vector<16x32xf32>
    %12 = arith.addf %11, %10 : vector<16x32xf32>
    %13 = arith.mulf %7, %12 : vector<16x32xf32>
    %c0_8 = arith.constant 0 : index
    %c0_9 = arith.constant 0 : index
    %14 = vector.load %arg2[%c0_8, %c0_9] : memref<16x32xf32, #tpu.memory_space<vmem>>, vector<16x32xf32>
    %c0_10 = arith.constant 0 : index
    %c0_11 = arith.constant 0 : index
    %15 = vector.load %arg4[%c0_10, %c0_11] : memref<32x32xf32, #tpu.memory_space<vmem>>, vector<32x32xf32>
    %cst_12 = arith.constant dense<0.000000e+00> : vector<16x32xf32>
    %16 = tpu.matmul %14, %15, %cst_12 {dimension_numbers = #tpu.dot_dimension_numbers<[1], [0], [0], [1], [0, 0, 1, 1], [], []>} : vector<16x32xf32>, vector<32x32xf32>, vector<16x32xf32> -> vector<16x32xf32>
    %c0_13 = arith.constant 0 : index
    %c0_14 = arith.constant 0 : index
    %17 = vector.load %arg5[%c0_13, %c0_14] : memref<1x32xf32, #tpu.memory_space<vmem>>, vector<1x32xf32>
    %18 = vector.broadcast %17 : vector<1x32xf32> to vector<16x32xf32>
    %19 = arith.addf %16, %18 : vector<16x32xf32>
    %20 = arith.mulf %19, %13 : vector<16x32xf32>
    %c0_15 = arith.constant 0 : index
    %c0_16 = arith.constant 0 : index
    %21 = vector.load %arg8[%c0_15, %c0_16] : memref<16x32xf32, #tpu.memory_space<vmem>>, vector<16x32xf32>
    tpu.vector_store %arg8[%c0_15, %c0_16], %20 {strides = array<i32>} : memref<16x32xf32, #tpu.memory_space<vmem>>, vector<16x32xf32>,
    return
  }
  func.func @transform_0(%arg0: i32, %arg1: i32) -> (i32, i32) {
    %c0_i32 = arith.constant 0 : i32
    %c0_i32_0 = arith.constant 0 : i32
    return %arg0, %c0_i32 : i32, i32
  }
  func.func @transform_1(%arg0: i32, %arg1: i32) -> (i32, i32) {
    %c0_i32 = arith.constant 0 : i32
    %c0_i32_0 = arith.constant 0 : i32
    return %arg0, %c0_i32 : i32, i32
  }
  func.func @transform_2(%arg0: i32, %arg1: i32) -> (i32, i32) {
    %c0_i32 = arith.constant 0 : i32
    %c0_i32_0 = arith.constant 0 : i32
    return %c0_i32, %arg1 : i32, i32
  }
  func.func @transform_3(%arg0: i32, %arg1: i32) -> (i32, i32) {
    %c0_i32 = arith.constant 0 : i32
    %c0_i32_0 = arith.constant 0 : i32
    return %c0_i32, %arg1 : i32, i32
  }
  func.func @transform_4(%arg0: i32, %arg1: i32) -> (i32, i32) {
    %c0_i32 = arith.constant 0 : i32
    %c0_i32_0 = arith.constant 0 : i32
    return %c0_i32, %arg1 : i32, i32
  }
  func.func @transform_5(%arg0: i32, %arg1: i32) -> (i32, i32) {
    %c0_i32 = arith.constant 0 : i32
    %c0_i32_0 = arith.constant 0 : i32
    return %c0_i32, %arg1 : i32, i32
  }
  func.func @transform_6(%arg0: i32, %arg1: i32) -> (i32, i32) {
    %c0_i32 = arith.constant 0 : i32
    return %arg0, %arg1 : i32, i32
  }
}

</mosaic_0001>

<llo_original>
// kernel: gmodfc.1
$region0: #{gmodfc.1}
  #allocation0 [shape = 'u32[]', space=smem, size = 0x4, offset = 0x4, fixed_abs, tag = 'smem constant byte address 0x4 - core index']
  #allocation1 [shape = 'u32[144,128]{1,0:T(1,128)}', space=vmem, size = 0x12000, scoped, tag = 'internal scratch']
  %s0 = inlined_call_operand.hbm [shape: f32[16,32], index: 0, kind: input, shape index: {}]
  %s1 = inlined_call_operand.hbm [shape: f32[16,16], index: 1, kind: input, shape index: {}]
  %s2 = inlined_call_operand.hbm [shape: f32[32,32], index: 2, kind: input, shape index: {}]
  %s3 = inlined_call_operand.vmem [shape: f32[1,32], index: 3, kind: input, shape index: {}]
  %s4 = inlined_call_operand.vmem [shape: f32[16,32], index: 4, kind: input, shape index: {}]
  %s5 = inlined_call_operand.vmem [shape: f32[1,32], index: 5, kind: input, shape index: {}]
  %s6 = inlined_call_operand.hbm [shape: f32[16,32], index: 6, kind: output, shape index: {}]
  %s7 = sld [smem:[#allocation0]]
  $region46: #{gmodfc.1} parent=0
    _
  %s9 = ssub.s32 1, %s7
  %s10 = scalar_select 0, %s9, %s7
  $region1: #{gmodfc.1} parent=0
    #allocation2 [shape = 'u8[8192]{0}', space=vmem, size = 0x2000, scoped, tag = 'input window, operand 0, single buffered']
    #allocation3 [shape = 's32[1]{0}', space=sflag, size = 0x4, scoped, tag = 'scoped memory for gmodfc.1']
    #allocation4 [shape = 's32[1]{0}', space=sflag, size = 0x4, scoped, tag = 'scoped memory for gmodfc.1']
    #allocation5 [shape = 'u8[8192]{0}', space=vmem, size = 0x2000, scoped, tag = 'input window, operand 1, single buffered']
    #allocation6 [shape = 's32[1]{0}', space=sflag, size = 0x4, scoped, tag = 'scoped memory for gmodfc.1']
    #allocation7 [shape = 'u8[16384]{0}', space=vmem, size = 0x4000, scoped, tag = 'input window, operand 2, single buffered']
    #allocation8 [shape = 'u8[8192]{0}', space=vmem, size = 0x2000, scoped, tag = 'output window, operand 0, single buffered']
    %11 = vsyncpa [#allocation3], 0
    %12 = vsyncpa [#allocation6], 0
    %13 = vsyncpa [#allocation4], 0
    // Predicated region
    $region2: #{gmodfc.1} parent=1 // pred_check
      _
    $region3: #{gmodfc.1} parent=1 // pred_check_branch
      %15 = sbr.rel (0) target = $region5
    $region4: #{gmodfc.1} parent=1 // pred_region
      %s17 = ssub.s32 256, 256
      %18 = vsyncadd [#allocation3], %s17
      %s19 = sshll.u32 [#allocation2], 4
      %s20 = int_to_ptr.vmem [resolvable:$true] %s19
      %25 = dma.hbm_to_vmem [thread:$0]  %s0, 256, %s20, [#allocation3], 128, 128, 8
    $region5: #{gmodfc.1} parent=1 // pred_fallthru
      _
    // Predicated region
    $region6: #{gmodfc.1} parent=1 // pred_check
      _
    $region7: #{gmodfc.1} parent=1 // pred_check_branch
      %27 = sbr.rel (0) target = $region9
    $region8: #{gmodfc.1} parent=1 // pred_region
      %s29 = ssub.s32 256, 256
      %30 = vsyncadd [#allocation6], %s29
      %s31 = sshll.u32 [#allocation5], 4
      %s32 = int_to_ptr.vmem [resolvable:$true] %s31
      %37 = dma.hbm_to_vmem [thread:$0]  %s1, 256, %s32, [#allocation6], 128, 128, 8
    $region9: #{gmodfc.1} parent=1 // pred_fallthru
      _
    // Predicated region
    $region10: #{gmodfc.1} parent=1 // pred_check
      _
    $region11: #{gmodfc.1} parent=1 // pred_check_branch
      %39 = sbr.rel (0) target = $region13
    $region12: #{gmodfc.1} parent=1 // pred_region
      %s41 = ssub.s32 512, 512
      %42 = vsyncadd [#allocation6], %s41
      %s43 = sshll.u32 [#allocation7], 4
      %s44 = int_to_ptr.vmem [resolvable:$true] %s43
      %49 = dma.hbm_to_vmem [thread:$0]  %s2, 512, %s44, [#allocation6], 128, 128, 8
    $region13: #{gmodfc.1} parent=1 // pred_fallthru
      _
    // Predicated region
    $region14: #{gmodfc.1} parent=1 // pred_check
      _
    $region15: #{gmodfc.1} parent=1 // pred_check_branch
      %51 = sbr.rel (0) target = $region17
    $region16: #{gmodfc.1} parent=1 // pred_region
      _
    $region17: #{gmodfc.1} parent=1 // pred_fallthru
      _
    // Predicated region
    $region18: #{gmodfc.1} parent=1 // pred_check
      _
    $region19: #{gmodfc.1} parent=1 // pred_check_branch
      %53 = sbr.rel (0) target = $region21
    $region20: #{gmodfc.1} parent=1 // pred_region
      _
    $region21: #{gmodfc.1} parent=1 // pred_fallthru
      _
    // Predicated region
    $region22: #{gmodfc.1} parent=1 // pred_check
      _
    $region23: #{gmodfc.1} parent=1 // pred_check_branch
      %55 = sbr.rel (0) target = $region25
    $region24: #{gmodfc.1} parent=1 // pred_region
      _
    $region25: #{gmodfc.1} parent=1 // pred_fallthru
      _
    // Predicated region
    $region26: #{gmodfc.1} parent=1 // pred_check
      _
    $region27: #{gmodfc.1} parent=1 // pred_check_branch
      %57 = sbr.rel (0) target = $region29
    $region28: #{gmodfc.1} parent=1 // pred_region
      %58 = dma.done [#allocation3], 256
    $region29: #{gmodfc.1} parent=1 // pred_fallthru
      _
    // Predicated region
    $region30: #{gmodfc.1} parent=1 // pred_check
      _
    $region31: #{gmodfc.1} parent=1 // pred_check_branch
      %60 = sbr.rel (0) target = $region33
    $region32: #{gmodfc.1} parent=1 // pred_region
      %61 = dma.done [#allocation6], 256
    $region33: #{gmodfc.1} parent=1 // pred_fallthru
      _
    // Predicated region
    $region34: #{gmodfc.1} parent=1 // pred_check
      _
    $region35: #{gmodfc.1} parent=1 // pred_check_branch
      %63 = sbr.rel (0) target = $region37
    $region36: #{gmodfc.1} parent=1 // pred_region
      %64 = dma.done [#allocation6], 512
    $region37: #{gmodfc.1} parent=1 // pred_fallthru
      _
    %v65 = vld [vmem:[#allocation5] sm:$0xff]
    %v66 = vld [vmem:[#allocation5 + $0x8] sm:$0xff]
    %v67 = vld [vmem:[%s4] sm:$0xff]
    %v68 = vld [vmem:[%s4 + $0x8] sm:$0xff]
    %v69 = vld [vmem:[%s5] sm:$0x1]
    %v71 = vlaneseq
    %v72 = vshrl.u32 %v71, 7
    %v73 = vsub.s32 0, %v72
    %v74 = vrot.slane %v69, %v73
    %vm76 = vcmask 130048
    %v78 = vsel %vm76, %v65, 0
    %v81 = vsel %vm76, %v66, 0
    %83 = vmatprep.subr.mxu0 0.0
    %84 = vmatpush1.msra.mxu0 %v67
    %85 = vmatprep.subr.mxu0 0.0
    %86 = vmatpush1.msra.mxu0 %v68
    %87 = vmatprep.subr.mxu0 0.0
    %88 = vmatpush1.msra.mxu0 0.0
    %89 = vmatprep.subr.mxu0 0.0
    %90 = vmatpush1.msra.mxu0 0.0
    %91 = vmatprep.subr.mxu0 0.0
    %92 = vmatpush1.msra.mxu0 0.0
    %93 = vmatprep.subr.mxu0 0.0
    %94 = vmatpush1.msra.mxu0 0.0
    %95 = vmatprep.subr.mxu0 0.0
    %96 = vmatpush1.msra.mxu0 0.0
    %97 = vmatprep.subr.mxu0 0.0
    %98 = vmatpush1.msra.mxu0 0.0
    %99 = vmatprep.subr.mxu0 0.0
    %100 = vmatpush1.msra.mxu0 0.0
    %101 = vmatprep.subr.mxu0 0.0
    %102 = vmatpush1.msra.mxu0 0.0
    %103 = vmatprep.subr.mxu0 0.0
    %104 = vmatpush1.msra.mxu0 0.0
    %105 = vmatprep.subr.mxu0 0.0
    %106 = vmatpush1.msra.mxu0 0.0
    %107 = vmatprep.subr.mxu0 0.0
    %108 = vmatpush1.msra.mxu0 0.0
    %109 = vmatprep.subr.mxu0 0.0
    %110 = vmatpush1.msra.mxu0 0.0
    %111 = vmatprep.subr.mxu0 0.0
    %112 = vmatpush1.msra.mxu0 0.0
    %113 = vmatprep.subr.mxu0 0.0
    %114 = vmatpush1.msra.mxu0 0.0
    %115 = vmatprep.subr.mxu0 0.0
    %116 = vmatpush1.msra.mxu0 0.0
    %117 = vmatprep.subr.mxu0 0.0
    %118 = vmatpush1.msra.mxu0 0.0
    %119 = vmatprep.subr.mxu0 0.0
    %120 = vmatpush1.msra.mxu0 0.0
    %121 = vmatprep.subr.mxu0 0.0
    %122 = vmatpush1.msra.mxu0 0.0
    %123 = vmatprep.subr.mxu0 0.0
    %124 = vmatpush1.msra.mxu0 0.0
    %125 = vmatprep.subr.mxu0 0.0
    %126 = vmatpush1.msra.mxu0 0.0
    %127 = vmatprep.subr.mxu0 0.0
    %128 = vmatpush1.msra.mxu0 0.0
    %129 = vmatprep.subr.mxu0 0.0
    %130 = vmatpush1.msra.mxu0 0.0
    %131 = vmatprep.subr.mxu0 0.0
    %132 = vmatpush1.msra.mxu0 0.0
    %133 = vmatprep.subr.mxu0 0.0
    %134 = vmatpush1.msra.mxu0 0.0
    %135 = vmatprep.subr.mxu0 0.0
    %136 = vmatpush1.msra.mxu0 0.0
    %137 = vmatprep.subr.mxu0 0.0
    %138 = vmatpush1.msra.mxu0 0.0
    %139 = vmatprep.subr.mxu0 0.0
    %140 = vmatpush1.msra.mxu0 0.0
    %141 = vmatprep.subr.mxu0 0.0
    %142 = vmatpush1.msra.mxu0 0.0
    %143 = vmatprep.subr.mxu0 0.0
    %144 = vmatpush1.msra.mxu0 0.0
    %145 = vmatprep.subr.mxu0 0.0
    %146 = vmatpush1.msra.mxu0 0.0
    %147 = vmatprep.mubr.f32.mxu0 0.0
    %148 = vmatmul.mubr.f32.gmra.mrb[0].mxu0 %v78
    %v149 = vpop.f32.mrb[0].mxu0
    %v150 = vadd.f32 %v74, %v149
    %v151 = vpop.f32.mrb[0].mxu0
    %152 = vmatprep.mubr.f32.mxu0 0.0
    %153 = vmatmul.mubr.f32.gmra.mrb[0].mxu0 %v81
    %v154 = vpop.f32.mrb[0].mxu0
    %v155 = vadd.f32 %v74, %v154
    %v156 = vpop.f32.mrb[0].mxu0
    %157 = vdwg.mxu0
    %v158 = vmul.f32 %v150, 0.5
    %v159 = vmul.f32 %v155, 0.5
    %v160 = vmul.f32 %v150, 0.70710677
    %v161 = vmul.f32 %v155, 0.70710677
    %v162 = verf.f32.pop %v160
    %v163 = verf.f32.pop %v161
    %v164 = vadd.f32 %v162, 1.0
    %v165 = vadd.f32 %v163, 1.0
    %v166 = vmul.f32 %v158, %v164
    %v167 = vmul.f32 %v159, %v165
    %v168 = vld [vmem:[#allocation2] sm:$0xff]
    %v169 = vld [vmem:[#allocation2 + $0x8] sm:$0xff]
    %v170 = vld [vmem:[#allocation7] sm:$0xff]
    %v171 = vld [vmem:[#allocation7 + $0x8] sm:$0xff]
    %v172 = vld [vmem:[#allocation7 + $0x10] sm:$0xff]
    %v173 = vld [vmem:[#allocation7 + $0x18] sm:$0xff]
    %v174 = vld [vmem:[%s3] sm:$0x1]
    %v176 = vlaneseq
    %v177 = vshrl.u32 %v176, 7
    %v178 = vsub.s32 0, %v177
    %v179 = vrot.slane %v174, %v178
    %vm181 = vcmask 261120
    %v183 = vsel %vm181, %v168, 0
    %v186 = vsel %vm181, %v169, 0
    %188 = vmatprep.subr.mxu0 0.0
    %189 = vmatpush1.msra.mxu0 %v170
    %190 = vmatprep.subr.mxu0 0.0
    %191 = vmatpush1.msra.mxu0 %v171
    %192 = vmatprep.subr.mxu0 0.0
    %193 = vmatpush1.msra.mxu0 %v172
    %194 = vmatprep.subr.mxu0 0.0
    %195 = vmatpush1.msra.mxu0 %v173
    %196 = vmatprep.subr.mxu0 0.0
    %197 = vmatpush1.msra.mxu0 0.0
    %198 = vmatprep.subr.mxu0 0.0
    %199 = vmatpush1.msra.mxu0 0.0
    %200 = vmatprep.subr.mxu0 0.0
    %201 = vmatpush1.msra.mxu0 0.0
    %202 = vmatprep.subr.mxu0 0.0
    %203 = vmatpush1.msra.mxu0 0.0
    %204 = vmatprep.subr.mxu0 0.0
    %205 = vmatpush1.msra.mxu0 0.0
    %206 = vmatprep.subr.mxu0 0.0
    %207 = vmatpush1.msra.mxu0 0.0
    %208 = vmatprep.subr.mxu0 0.0
    %209 = vmatpush1.msra.mxu0 0.0
    %210 = vmatprep.subr.mxu0 0.0
    %211 = vmatpush1.msra.mxu0 0.0
    %212 = vmatprep.subr.mxu0 0.0
    %213 = vmatpush1.msra.mxu0 0.0
    %214 = vmatprep.subr.mxu0 0.0
    %215 = vmatpush1.msra.mxu0 0.0
    %216 = vmatprep.subr.mxu0 0.0
    %217 = vmatpush1.msra.mxu0 0.0
    %218 = vmatprep.subr.mxu0 0.0
    %219 = vmatpush1.msra.mxu0 0.0
    %220 = vmatprep.subr.mxu0 0.0
    %221 = vmatpush1.msra.mxu0 0.0
    %222 = vmatprep.subr.mxu0 0.0
    %223 = vmatpush1.msra.mxu0 0.0
    %224 = vmatprep.subr.mxu0 0.0
    %225 = vmatpush1.msra.mxu0 0.0
    %226 = vmatprep.subr.mxu0 0.0
    %227 = vmatpush1.msra.mxu0 0.0
    %228 = vmatprep.subr.mxu0 0.0
    %229 = vmatpush1.msra.mxu0 0.0
    %230 = vmatprep.subr.mxu0 0.0
    %231 = vmatpush1.msra.mxu0 0.0
    %232 = vmatprep.subr.mxu0 0.0
    %233 = vmatpush1.msra.mxu0 0.0
    %234 = vmatprep.subr.mxu0 0.0
    %235 = vmatpush1.msra.mxu0 0.0
    %236 = vmatprep.subr.mxu0 0.0
    %237 = vmatpush1.msra.mxu0 0.0
    %238 = vmatprep.subr.mxu0 0.0
    %239 = vmatpush1.msra.mxu0 0.0
    %240 = vmatprep.subr.mxu0 0.0
    %241 = vmatpush1.msra.mxu0 0.0
    %242 = vmatprep.subr.mxu0 0.0
    %243 = vmatpush1.msra.mxu0 0.0
    %244 = vmatprep.subr.mxu0 0.0
    %245 = vmatpush1.msra.mxu0 0.0
    %246 = vmatprep.subr.mxu0 0.0
    %247 = vmatpush1.msra.mxu0 0.0
    %248 = vmatprep.subr.mxu0 0.0
    %249 = vmatpush1.msra.mxu0 0.0
    %250 = vmatprep.subr.mxu0 0.0
    %251 = vmatpush1.msra.mxu0 0.0
    %252 = vmatprep.mubr.f32.mxu0 0.0
    %253 = vmatmul.mubr.f32.gmra.mrb[0].mxu0 %v183
    %v254 = vpop.f32.mrb[0].mxu0
    %v255 = vadd.f32 %v179, %v254
    %v256 = vpop.f32.mrb[0].mxu0
    %257 = vmatprep.mubr.f32.mxu0 0.0
    %258 = vmatmul.mubr.f32.gmra.mrb[0].mxu0 %v186
    %v259 = vpop.f32.mrb[0].mxu0
    %v260 = vadd.f32 %v179, %v259
    %v261 = vpop.f32.mrb[0].mxu0
    %262 = vdwg.mxu0
    %v263 = vmul.f32 %v255, %v166
    %v264 = vmul.f32 %v260, %v167
    %265 = vst.msk [vmem:[#allocation8] sm:$0xff] %vm181, %v263
    %266 = vst.msk [vmem:[#allocation8 + $0x8] sm:$0xff] %vm181, %v264
    // Predicated region
    $region38: #{gmodfc.1} parent=1 // pred_check
      _
    $region39: #{gmodfc.1} parent=1 // pred_check_branch
      %268 = sbr.rel (0) target = $region41
    $region40: #{gmodfc.1} parent=1 // pred_region
      %s270 = ssub.s32 256, 256
      %271 = vsyncadd [#allocation4], %s270
      %s272 = sshll.u32 [#allocation8], 4
      %s273 = int_to_ptr.vmem [resolvable:$true] %s272
      %278 = dma.vmem_to_hbm [thread:$0]  %s273, 256, %s6, [#allocation4], 128, 128, 8
    $region41: #{gmodfc.1} parent=1 // pred_fallthru
      _
    // Predicated region
    $region42: #{gmodfc.1} parent=1 // pred_check
      _
    $region43: #{gmodfc.1} parent=1 // pred_check_branch
      %280 = sbr.rel (0) target = $region45
    $region44: #{gmodfc.1} parent=1 // pred_region
      %281 = dma.done [#allocation4], 256
    $region45: #{gmodfc.1} parent=1 // pred_fallthru
      _
    %282 = vsyncpa [#allocation3], 1
    %283 = vsyncpa [#allocation6], 1
    %284 = vsyncpa [#allocation4], 1

</llo_original>
